<compile_context>
chip_gen: v6e
topology: v6e:2x2x1
jax: 0.10.0
libtpu: 0.0.40
codegen_flags: <defaults>
</compile_context>

<pallas_src>
import functools

import numpy as np
import jax
import jax.numpy as jnp
from jax.experimental import pallas as pl
from jax.experimental.pallas import tpu as pltpu

# Padded per-diagram sizes (a persistence diagram is a set of (birth, death) bars).
N0 = 16
N1 = 16
NT = N0 + N1            # augmented assignment-problem size
AUX_ROWS = 8            # extra sublane-aligned rows carrying diag1 / lb / ub
LANES = 128             # lane-dense output width (TPU vreg lane count)
BIG = 1e30              # "forbidden" pairing cost (Python float -> inline literal)
BB_MAX = 256            # batch-block cap: ~26 KiB/pair double-buffered -> ~6.8 MiB,
                        # safely under v5e's 16 MiB scoped-VMEM default.


def _bottleneck_cost_kernel(dgm0_ref, dgm1t_ref, out_ref):
    # dgm0_ref : (BB, N0, 2)    float32, columns (birth, death); padding rows birth==death
    # dgm1t_ref: (BB, 2, 128)   float32, dgm1 transposed + zero-padded to 128 lanes
    # out_ref  : (BB, N0+8, 128)
    #   rows [0, N0): top half of the augmented cost matrix:
    #       lanes [0,N1)   = L-inf(p0_i, p1_j) (BIG if either bar removed)
    #       lanes [N1,NT)  = diag-dist(p0_i) broadcast (0 if removed)
    #       lanes [NT,128) = BIG (padding, sliced off in the wrapper)
    #   row N0   = diag-dist(p1_j) at lane j
    #   row N0+1 = lower bound, row N0+2 = upper bound (broadcast over lanes)
    bb = dgm0_ref.shape[0]

    b0 = dgm0_ref[:, :, 0:1]            # (BB, N0, 1)
    d0 = dgm0_ref[:, :, 1:2]            # (BB, N0, 1)
    b1 = dgm1t_ref[:, 0:1, :]           # (BB, 1, 128)
    d1 = dgm1t_ref[:, 1:2, :]           # (BB, 1, 128)

    # remove_zero_bars: keep a bar iff birth != death (padding lanes/rows are 0,0)
    valid0 = b0 != d0                   # (BB, N0, 1)
    valid1 = b1 != d1                   # (BB, 1, 128)   lanes >= N1 are invalid

    # pairwise L-infinity distance between diagram points
    pair = jnp.maximum(jnp.abs(b0 - b1), jnp.abs(d0 - d1))      # (BB, N0, 128)
    pair = jnp.where(valid0 & valid1, pair, BIG)

    # distance of each point to the diagonal (removed bars -> 0, i.e. absent)
    diag0 = jnp.where(valid0, 0.5 * jnp.abs(d0 - b0), 0.0)      # (BB, N0, 1)
    diag1 = jnp.where(valid1, 0.5 * jnp.abs(d1 - b1), 0.0)      # (BB, 1, 128)

    # Top row-block: `pair` already holds BIG at lanes >= N1, so a single select
    # splices in the diag0 band (lanes [N1, NT)); lanes >= NT stay BIG.
    lane = jax.lax.broadcasted_iota(jnp.int32, (bb, N0, LANES), 2)
    top = jnp.where((lane >= N1) & (lane < NT), diag0, pair)    # (BB, N0, 128)
    out_ref[:, 0:N0, :] = top

    # Device-side bounds to prune the host binary search (XLU reductions: ~free).
    # lower bound: every row/column must be matched at >= its row/column min
    rowmin = jnp.min(top, axis=2, keepdims=True)                          # (BB, N0, 1)
    lb_rows = jnp.max(rowmin, axis=1, keepdims=True)                      # (BB, 1, 1)
    colmin = jnp.minimum(jnp.min(pair, axis=1, keepdims=True), diag1)     # (BB, 1, 128)
    lb_cols = jnp.max(colmin, axis=2, keepdims=True)                      # (BB, 1, 1)
    lb = jnp.maximum(lb_rows, lb_cols)                                    # (BB, 1, 1)
    # upper bound: match every point to the diagonal (always feasible)
    ub = jnp.maximum(jnp.max(diag0, axis=1, keepdims=True),
                     jnp.max(diag1, axis=2, keepdims=True))               # (BB, 1, 1)

    # Aux rows assembled lane-densely via row-iota selects, one aligned 8-row store.
    row = jax.lax.broadcasted_iota(jnp.int32, (bb, AUX_ROWS, LANES), 1)
    diag1_b = jnp.broadcast_to(diag1, (bb, AUX_ROWS, LANES))
    lb_b = jnp.broadcast_to(lb, (bb, AUX_ROWS, LANES))
    ub_b = jnp.broadcast_to(ub, (bb, AUX_ROWS, LANES))
    aux = jnp.where(row == 0, diag1_b,
          jnp.where(row == 1, lb_b,
          jnp.where(row == 2, ub_b, 0.0)))
    out_ref[:, N0:N0 + AUX_ROWS, :] = aux


@functools.partial(jax.jit, static_argnames=("bb",))
def bottleneck_cost_batched(dgm0, dgm1, *, bb):
    """dgm0: (B, N0, 2), dgm1: (B, N1, 2) -> (B, N0+3, NT) compact cost/bounds block."""
    B = dgm0.shape[0]
    dgm0 = dgm0.astype(jnp.float32)
    # Single batched transpose + pad (amortized over B) so birth/death of dgm1
    # sit along lanes and every kernel store is lane-dense.
    dgm1t = jnp.swapaxes(dgm1.astype(jnp.float32), -1, -2)       # (B, 2, N1)
    dgm1t = jnp.pad(dgm1t, ((0, 0), (0, 0), (0, LANES - N1)))    # (B, 2, 128)

    # Pad the batch to a multiple of bb with all-zero (= empty) diagrams.
    b_pad = ((B + bb - 1) // bb) * bb
    if b_pad != B:
        dgm0 = jnp.pad(dgm0, ((0, b_pad - B), (0, 0), (0, 0)))
        dgm1t = jnp.pad(dgm1t, ((0, b_pad - B), (0, 0), (0, 0)))

    out = pl.pallas_call(
        _bottleneck_cost_kernel,
        out_shape=jax.ShapeDtypeStruct((b_pad, N0 + AUX_ROWS, LANES), jnp.float32),
        grid=(b_pad // bb,),
        in_specs=[
            pl.BlockSpec((bb, N0, 2), lambda g: (g, 0, 0)),
            pl.BlockSpec((bb, 2, LANES), lambda g: (g, 0, 0)),
        ],
        out_specs=pl.BlockSpec((bb, N0 + AUX_ROWS, LANES), lambda g: (g, 0, 0)),
        compiler_params=pltpu.CompilerParams(
            dimension_semantics=("parallel",)),
    )(dgm0, dgm1t)

    # Slice off batch / row / lane padding inside the jit so only the useful
    # bytes (~2.4 KiB per pair) cross D2H.  Row layout of the compact block:
    #   [0, N0)  top half of augmented cost matrix (lanes [0, NT))
    #   N0       diag1, N0+1 lb, N0+2 ub
    return out[:B, :N0 + 3, :NT]


def _choose_bb(B):
    """Batch-block size: >= 2 grid steps when possible (v7x megacore), VMEM-capped."""
    if B <= 1:
        return 1
    return int(min(BB_MAX, (B + 1) // 2))


# ----------------------------------------------------------------------------
# Host-side combinatorics (no clean Pallas equivalent).
# ----------------------------------------------------------------------------
def _has_perfect_matching(adj):
    """Kuhn's augmenting-path algorithm: does a perfect matching exist?"""
    L, R = adj.shape
    match_r = -np.ones(R, dtype=np.int64)
    adj_lists = [np.nonzero(adj[u])[0] for u in range(L)]

    def try_augment(u, seen):
        for v in adj_lists[u]:
            if not seen[v]:
                seen[v] = True
                if match_r[v] < 0 or try_augment(int(match_r[v]), seen):
                    match_r[v] = u
                    return True
        return False

    matched = 0
    for u in range(L):
        if try_augment(u, np.zeros(R, dtype=bool)):
            matched += 1
    return matched == L


def _solve_one(blk):
    """Bottleneck distance of one pair from the kernel's compact (N0+3, NT) block."""
    lb = float(blk[N0 + 1, 0])
    ub = float(blk[N0 + 2, 0])
    if ub <= lb:                      # bounds coincide -> answer is known
        return float(ub)

    # Reconstruct the full augmented cost matrix (bottom half was never shipped).
    diag1 = blk[N0, :N1]
    C = np.empty((NT, NT), dtype=np.float32)
    C[:N0, :] = blk[:N0, :NT]
    C[N0:, :N1] = np.broadcast_to(diag1[None, :], (N1, N1))
    C[N0:, N1:] = 0.0

    # TODO(synk): the combinatorial bottleneck matching (threshold binary search +
    # bipartite augmenting paths) has no clean Pallas equivalent; it runs on host.
    vals = np.unique(C[C < 1e29])
    pruned = vals[(vals >= lb) & (vals <= ub)]
    if pruned.size:
        vals = pruned
    if vals.size == 0:
        return 0.0
    lo, hi = 0, len(vals) - 1
    while lo < hi:
        mid = (lo + hi) // 2
        if _has_perfect_matching(C <= vals[mid]):
            hi = mid
        else:
            lo = mid + 1
    return float(vals[lo])


def bottleneck_layer_forward(dgm0, dgm1):
    """Exact BottleneckLayer.forward semantics.

    Accepts a single pair ((N0,2),(N1,2)) -> float, or a batch
    ((B,N0,2),(B,N1,2)) -> list of floats. One pallas_call per batch.
    """
    single = (dgm0.ndim == 2)
    if single:
        dgm0, dgm1 = dgm0[None], dgm1[None]
    assert dgm0.shape[1:] == (N0, 2) and dgm1.shape[1:] == (N1, 2)

    bb = _choose_bb(dgm0.shape[0])
    blocks = bottleneck_cost_batched(dgm0, dgm1, bb=bb)
    blocks = np.asarray(jax.block_until_ready(blocks))

    dists = [_solve_one(blocks[b]) for b in range(blocks.shape[0])]
    return dists[0] if single else dists


# ----------------------------------------------------------------------------
# Pure-numpy reference (unpadded, unpruned) for correctness checking.
# ----------------------------------------------------------------------------
def _reference_bottleneck(dgm0, dgm1):
    d0 = np.asarray(dgm0, np.float32)
    d1 = np.asarray(dgm1, np.float32)
    d0 = d0[d0[:, 0] != d0[:, 1]]
    d1 = d1[d1[:, 0] != d1[:, 1]]
    n0, n1 = d0.shape[0], d1.shape[0]
    if n0 == 0 and n1 == 0:
        return 0.0
    C = np.zeros((n0 + n1, n1 + n0), np.float32)
    if n0 and n1:
        C[:n0, :n1] = np.maximum(np.abs(d0[:, 0:1] - d1[None, :, 0]),
                                 np.abs(d0[:, 1:2] - d1[None, :, 1]))
    if n0:
        C[:n0, n1:] = (0.5 * np.abs(d0[:, 1] - d0[:, 0]))[:, None]
    if n1:
        C[n0:, :n1] = (0.5 * np.abs(d1[:, 1] - d1[:, 0]))[None, :]
    vals = np.unique(C)
    lo, hi = 0, len(vals) - 1
    while lo < hi:
        mid = (lo + hi) // 2
        if _has_perfect_matching(C <= vals[mid]):
            hi = mid
        else:
            lo = mid + 1
    return float(vals[lo])


if __name__ == "__main__":
    B = 8
    key = jax.random.PRNGKey(0)
    k0, k1, k2, k3 = jax.random.split(key, 4)

    # Diagram batch 0: per-pair real-bar counts; remaining rows become zero bars
    # (birth == death), which remove_zero_bars must drop.
    birth0 = jax.random.uniform(k0, (B, N0), dtype=jnp.float32)
    pers0 = jax.random.uniform(k1, (B, N0), dtype=jnp.float32, minval=0.05, maxval=1.0)
    full0 = jnp.stack([birth0, birth0 + pers0], axis=-1)         # (B, N0, 2)
    zero0 = jnp.stack([birth0, birth0], axis=-1)                 # zero bars
    n_real0 = jnp.array([10, 12, 7, 16, 3, 0, 14, 8])
    keep0 = (jnp.arange(N0)[None, :] < n_real0[:, None])[..., None]
    dgm0 = jnp.where(keep0, full0, zero0)

    birth1 = jax.random.uniform(k2, (B, N1), dtype=jnp.float32)
    pers1 = jax.random.uniform(k3, (B, N1), dtype=jnp.float32, minval=0.05, maxval=1.0)
    full1 = jnp.stack([birth1, birth1 + pers1], axis=-1)         # (B, N1, 2)
    zero1 = jnp.stack([birth1, birth1], axis=-1)
    n_real1 = jnp.array([9, 16, 0, 5, 11, 0, 2, 16])             # includes empty diagrams
    keep1 = (jnp.arange(N1)[None, :] < n_real1[:, None])[..., None]
    dgm1 = jnp.where(keep1, full1, zero1)

    dists = bottleneck_layer_forward(dgm0, dgm1)

    d0_np = np.asarray(dgm0)
    d1_np = np.asarray(dgm1)
    for b in range(B):
        ref = _reference_bottleneck(d0_np[b], d1_np[b])
        assert np.isfinite(dists[b]) and dists[b] >= 0.0
        assert abs(dists[b] - ref) <= 1e-5, (b, dists[b], ref)

    # Also exercise the single-pair path.
    d_single = bottleneck_layer_forward(dgm0[0], dgm1[0])
    assert abs(d_single - _reference_bottleneck(d0_np[0], d1_np[0])) <= 1e-5

    print("KERNEL_OK")
</pallas_src>

<mosaic_0001>
module attributes {stable_mosaic.version = 11 : i64} {
  func.func @_bottleneck_cost_kernel(%arg0: i32, %arg1: memref<4x16x2xf32, #tpu.memory_space<vmem>>, %arg2: memref<4x2x128xf32, #tpu.memory_space<vmem>>, %arg3: memref<4x24x128xf32, #tpu.memory_space<vmem>>) attributes {dimension_semantics = [#tpu.dimension_semantics<parallel>], iteration_bounds = array<i64: 2>, scalar_prefetch = 0 : i64, scratch_operands = 0 : i64, tpu.core_type = #tpu.core_type<tc>, window_params = [{transform_indices = @transform_0, window_bounds = array<i64: 4, 16, 2>}, {transform_indices = @transform_1, window_bounds = array<i64: 4, 2, 128>}, {transform_indices = @transform_2, window_bounds = array<i64: 4, 24, 128>}]} {
    %c0 = arith.constant 0 : index
    %c0_0 = arith.constant 0 : index
    %c0_1 = arith.constant 0 : index
    %0 = vector.load %arg1[%c0, %c0_0, %c0_1] : memref<4x16x2xf32, #tpu.memory_space<vmem>>, vector<4x16x1xf32>
    %c0_2 = arith.constant 0 : index
    %c0_3 = arith.constant 0 : index
    %c1 = arith.constant 1 : index
    %1 = vector.load %arg1[%c0_2, %c0_3, %c1] : memref<4x16x2xf32, #tpu.memory_space<vmem>>, vector<4x16x1xf32>
    %c0_4 = arith.constant 0 : index
    %c0_5 = arith.constant 0 : index
    %c0_6 = arith.constant 0 : index
    %2 = vector.load %arg2[%c0_4, %c0_5, %c0_6] : memref<4x2x128xf32, #tpu.memory_space<vmem>>, vector<4x1x128xf32>
    %c0_7 = arith.constant 0 : index
    %c1_8 = arith.constant 1 : index
    %c0_9 = arith.constant 0 : index
    %3 = vector.load %arg2[%c0_7, %c1_8, %c0_9] : memref<4x2x128xf32, #tpu.memory_space<vmem>>, vector<4x1x128xf32>
    %4 = arith.cmpf one, %0, %1 : vector<4x16x1xf32>
    %5 = arith.cmpf one, %2, %3 : vector<4x1x128xf32>
    %6 = vector.broadcast %0 : vector<4x16x1xf32> to vector<4x16x128xf32>
    %7 = vector.broadcast %2 : vector<4x1x128xf32> to vector<4x16x128xf32>
    %8 = arith.subf %6, %7 : vector<4x16x128xf32>
    %9 = math.absf %8 : vector<4x16x128xf32>
    %10 = vector.broadcast %1 : vector<4x16x1xf32> to vector<4x16x128xf32>
    %11 = vector.broadcast %3 : vector<4x1x128xf32> to vector<4x16x128xf32>
    %12 = arith.subf %10, %11 : vector<4x16x128xf32>
    %13 = math.absf %12 : vector<4x16x128xf32>
    %14 = arith.maximumf %9, %13 : vector<4x16x128xf32>
    %15 = vector.broadcast %4 : vector<4x16x1xi1> to vector<4x16x128xi1>
    %16 = vector.broadcast %5 : vector<4x1x128xi1> to vector<4x16x128xi1>
    %17 = arith.andi %15, %16 : vector<4x16x128xi1>
    %cst = arith.constant 1.000000e+30 : f32
    %18 = vector.broadcast %cst : f32 to vector<4x16x128xf32>
    %19 = arith.select %17, %14, %18 : vector<4x16x128xi1>, vector<4x16x128xf32>
    %20 = arith.subf %1, %0 : vector<4x16x1xf32>
    %21 = math.absf %20 : vector<4x16x1xf32>
    %cst_10 = arith.constant 5.000000e-01 : f32
    %22 = vector.broadcast %cst_10 : f32 to vector<4x16x1xf32>
    %23 = arith.mulf %22, %21 : vector<4x16x1xf32>
    %cst_11 = arith.constant 0.000000e+00 : f32
    %24 = vector.broadcast %cst_11 : f32 to vector<4x16x1xf32>
    %25 = arith.select %4, %23, %24 : vector<4x16x1xi1>, vector<4x16x1xf32>
    %26 = arith.subf %3, %2 : vector<4x1x128xf32>
    %27 = math.absf %26 : vector<4x1x128xf32>
    %cst_12 = arith.constant 5.000000e-01 : f32
    %28 = vector.broadcast %cst_12 : f32 to vector<4x1x128xf32>
    %29 = arith.mulf %28, %27 : vector<4x1x128xf32>
    %cst_13 = arith.constant 0.000000e+00 : f32
    %30 = vector.broadcast %cst_13 : f32 to vector<4x1x128xf32>
    %31 = arith.select %5, %29, %30 : vector<4x1x128xi1>, vector<4x1x128xf32>
    %32 = tpu.iota {dimensions = array<i32: 2>} : vector<4x16x128xi32>
    %c16_i32 = arith.constant 16 : i32
    %33 = vector.broadcast %c16_i32 : i32 to vector<4x16x128xi32>
    %34 = arith.cmpi sge, %32, %33 : vector<4x16x128xi32>
    %c32_i32 = arith.constant 32 : i32
    %35 = vector.broadcast %c32_i32 : i32 to vector<4x16x128xi32>
    %36 = arith.cmpi slt, %32, %35 : vector<4x16x128xi32>
    %37 = arith.andi %34, %36 : vector<4x16x128xi1>
    %38 = vector.shape_cast %25 : vector<4x16x1xf32> to vector<4x16x1xf32>
    %39 = vector.broadcast %38 : vector<4x16x1xf32> to vector<4x16x128xf32>
    %40 = arith.select %37, %39, %19 : vector<4x16x128xi1>, vector<4x16x128xf32>
    %c0_14 = arith.constant 0 : index
    %c0_15 = arith.constant 0 : index
    %c0_16 = arith.constant 0 : index
    %41 = vector.load %arg3[%c0_14, %c0_15, %c0_16] : memref<4x24x128xf32, #tpu.memory_space<vmem>>, vector<4x16x128xf32>
    tpu.vector_store %arg3[%c0_14, %c0_15, %c0_16], %40 {strides = array<i32>} : memref<4x24x128xf32, #tpu.memory_space<vmem>>, vector<4x16x128xf32>,
    %cst_17 = arith.constant dense<0x7F800000> : vector<4x16xf32>
    %42 = vector.multi_reduction <minimumf>, %40, %cst_17 [2] : vector<4x16x128xf32> to vector<4x16xf32>
    %43 = vector.shape_cast %42 : vector<4x16xf32> to vector<4x16x1xf32>
    %cst_18 = arith.constant dense<0xFF800000> : vector<4x1xf32>
    %44 = vector.multi_reduction <maximumf>, %43, %cst_18 [1] : vector<4x16x1xf32> to vector<4x1xf32>
    %45 = vector.shape_cast %44 : vector<4x1xf32> to vector<4x1x1xf32>
    %cst_19 = arith.constant dense<0x7F800000> : vector<4x128xf32>
    %46 = vector.multi_reduction <minimumf>, %19, %cst_19 [1] : vector<4x16x128xf32> to vector<4x128xf32>
    %47 = vector.shape_cast %46 : vector<4x128xf32> to vector<4x1x128xf32>
    %48 = arith.minimumf %47, %31 : vector<4x1x128xf32>
    %cst_20 = arith.constant dense<0xFF800000> : vector<4x1xf32>
    %49 = vector.multi_reduction <maximumf>, %48, %cst_20 [2] : vector<4x1x128xf32> to vector<4x1xf32>
    %50 = vector.shape_cast %49 : vector<4x1xf32> to vector<4x1x1xf32>
    %51 = arith.maximumf %45, %50 : vector<4x1x1xf32>
    %cst_21 = arith.constant dense<0xFF800000> : vector<4x1xf32>
    %52 = vector.multi_reduction <maximumf>, %25, %cst_21 [1] : vector<4x16x1xf32> to vector<4x1xf32>
    %53 = vector.shape_cast %52 : vector<4x1xf32> to vector<4x1x1xf32>
    %cst_22 = arith.constant dense<0xFF800000> : vector<4x1xf32>
    %54 = vector.multi_reduction <maximumf>, %31, %cst_22 [2] : vector<4x1x128xf32> to vector<4x1xf32>
    %55 = vector.shape_cast %54 : vector<4x1xf32> to vector<4x1x1xf32>
    %56 = arith.maximumf %53, %55 : vector<4x1x1xf32>
    %57 = tpu.iota {dimensions = array<i32: 1>} : vector<4x8x128xi32>
    %58 = vector.shape_cast %31 : vector<4x1x128xf32> to vector<4x1x128xf32>
    %59 = vector.broadcast %58 : vector<4x1x128xf32> to vector<4x8x128xf32>
    %60 = vector.shape_cast %51 : vector<4x1x1xf32> to vector<4x1x1xf32>
    %61 = vector.broadcast %60 : vector<4x1x1xf32> to vector<4x8x128xf32>
    %62 = vector.shape_cast %56 : vector<4x1x1xf32> to vector<4x1x1xf32>
    %63 = vector.broadcast %62 : vector<4x1x1xf32> to vector<4x8x128xf32>
    %c0_i32 = arith.constant 0 : i32
    %64 = vector.broadcast %c0_i32 : i32 to vector<4x8x128xi32>
    %65 = arith.cmpi eq, %57, %64 : vector<4x8x128xi32>
    %c1_i32 = arith.constant 1 : i32
    %66 = vector.broadcast %c1_i32 : i32 to vector<4x8x128xi32>
    %67 = arith.cmpi eq, %57, %66 : vector<4x8x128xi32>
    %c2_i32 = arith.constant 2 : i32
    %68 = vector.broadcast %c2_i32 : i32 to vector<4x8x128xi32>
    %69 = arith.cmpi eq, %57, %68 : vector<4x8x128xi32>
    %cst_23 = arith.constant 0.000000e+00 : f32
    %70 = vector.broadcast %cst_23 : f32 to vector<4x8x128xf32>
    %71 = arith.select %69, %63, %70 : vector<4x8x128xi1>, vector<4x8x128xf32>
    %72 = arith.select %67, %61, %71 : vector<4x8x128xi1>, vector<4x8x128xf32>
    %73 = arith.select %65, %59, %72 : vector<4x8x128xi1>, vector<4x8x128xf32>
    %c0_24 = arith.constant 0 : index
    %c16 = arith.constant 16 : index
    %c0_25 = arith.constant 0 : index
    %74 = vector.load %arg3[%c0_24, %c16, %c0_25] : memref<4x24x128xf32, #tpu.memory_space<vmem>>, vector<4x8x128xf32>
    tpu.vector_store %arg3[%c0_24, %c16, %c0_25], %73 {strides = array<i32>} : memref<4x24x128xf32, #tpu.memory_space<vmem>>, vector<4x8x128xf32>,
    return
  }
  func.func @transform_0(%arg0: i32) -> (i32, i32, i32) {
    %c0_i32 = arith.constant 0 : i32
    %c0_i32_0 = arith.constant 0 : i32
    %c0_i32_1 = arith.constant 0 : i32
    return %arg0, %c0_i32, %c0_i32_0 : i32, i32, i32
  }
  func.func @transform_1(%arg0: i32) -> (i32, i32, i32) {
    %c0_i32 = arith.constant 0 : i32
    %c0_i32_0 = arith.constant 0 : i32
    %c0_i32_1 = arith.constant 0 : i32
    return %arg0, %c0_i32, %c0_i32_0 : i32, i32, i32
  }
  func.func @transform_2(%arg0: i32) -> (i32, i32, i32) {
    %c0_i32 = arith.constant 0 : i32
    %c0_i32_0 = arith.constant 0 : i32
    %c0_i32_1 = arith.constant 0 : i32
    return %arg0, %c0_i32, %c0_i32_0 : i32, i32, i32
  }
}

</mosaic_0001>

<llo_original>
// kernel: bottleneck_cost_batched.1
$region0: #{bottleneck_cost_batched.1}
  #allocation0 [shape = 'u32[]', space=smem, size = 0x4, offset = 0x4, fixed_abs, tag = 'smem constant byte address 0x4 - core index']
  #allocation1 [shape = 'u32[144,128]{1,0:T(1,128)}', space=vmem, size = 0x12000, scoped, tag = 'internal scratch']
  %s0 = inlined_call_operand.vmem [shape: f32[8,16,2], index: 0, kind: input, shape index: {}]
  %s1 = inlined_call_operand.vmem [shape: f32[8,2,128], index: 1, kind: input, shape index: {}]
  %s2 = inlined_call_operand.vmem [shape: f32[8,24,128], index: 2, kind: output, shape index: {}]
  %s3 = sld [smem:[#allocation0]]
  $region41: #{bottleneck_cost_batched.1} parent=0
    _
  %s5 = ssub.s32 1, %s3
  %s6 = scalar_select 0, %s5, %s3
  loop: start=0, step=1, limit=4
  $region2: #{bottleneck_cost_batched.1} parent=0 // loop_pre_header
    _
  $region3: #{bottleneck_cost_batched.1} parent=0 // loop_header
    %s8 = sphi 0, %s12
    %p9 = scmp.ge.s32.totalorder %s8, 4
    %s18 = sphi 0, %s20
    %s21 = sphi 0, %s18
    %s22 = sphi 0, %s21
    %s38 = sphi 0, %s22
    %s44 = sphi 0, %s46
    %s47 = sphi 0, %s44
    %s48 = sphi 0, %s47
    %s64 = sphi 0, %s48
    %s70 = sphi 0, %s72
    %s73 = sphi 0, %s70
    %s74 = sphi 0, %s73
    %s90 = sphi 0, %s74
  $region4: #{bottleneck_cost_batched.1} parent=0 // loop_header_branch
    %11 = sbr.rel (%p9) target = $region8
  $region5: #{bottleneck_cost_batched.1} parent=0 // loop_body
    %s13 = ssub.s32 %s8, 1
    %s14 = ssub.s32 %s8, 2
    %s15 = sadd.s32 %s8, 1
    %s16 = ssub.s32 %s8, %s15
    %p17 = scmp.eq.s32.totalorder %s16, 0
    %s19 = sadd.s32 %s18, 1
    %s20 = scalar_select %p17, %s18, %s19
    %p23 = pneg %p17
    %p24 = scmp.eq.s32.totalorder %s8, 1
    %p25 = por %p23, %p24
    %p26 = scmp.ne.s32.totalorder %s18, %s21
    %p27 = scmp.eq.s32.totalorder %s8, 0
    %p28 = por %p26, %p27
    %p29 = scmp.ne.s32.totalorder %s18, %s21
    %p30 = scmp.eq.s32.totalorder %s13, 1
    %p31 = por %p29, %p30
    %p32 = scmp.ne.s32.totalorder %s21, %s22
    %p33 = scmp.eq.s32.totalorder %s13, 0
    %p34 = por %p32, %p33
    %p35 = scmp.ne.s32.totalorder %s21, %s22
    %p36 = scmp.eq.s32.totalorder %s14, 1
    %p37 = por %p35, %p36
    %p39 = scmp.ne.s32.totalorder %s22, %s38
    %p40 = scmp.eq.s32.totalorder %s14, 0
    %p41 = por %p39, %p40
    %s42 = ssub.s32 %s8, %s15
    %p43 = scmp.eq.s32.totalorder %s42, 0
    %s45 = sadd.s32 %s44, 1
    %s46 = scalar_select %p43, %s44, %s45
    %p49 = pneg %p43
    %p50 = scmp.eq.s32.totalorder %s8, 1
    %p51 = por %p49, %p50
    %p52 = scmp.ne.s32.totalorder %s44, %s47
    %p53 = scmp.eq.s32.totalorder %s8, 0
    %p54 = por %p52, %p53
    %p55 = scmp.ne.s32.totalorder %s44, %s47
    %p56 = scmp.eq.s32.totalorder %s13, 1
    %p57 = por %p55, %p56
    %p58 = scmp.ne.s32.totalorder %s47, %s48
    %p59 = scmp.eq.s32.totalorder %s13, 0
    %p60 = por %p58, %p59
    %p61 = scmp.ne.s32.totalorder %s47, %s48
    %p62 = scmp.eq.s32.totalorder %s14, 1
    %p63 = por %p61, %p62
    %p65 = scmp.ne.s32.totalorder %s48, %s64
    %p66 = scmp.eq.s32.totalorder %s14, 0
    %p67 = por %p65, %p66
    %s68 = ssub.s32 %s8, %s15
    %p69 = scmp.eq.s32.totalorder %s68, 0
    %s71 = sadd.s32 %s70, 1
    %s72 = scalar_select %p69, %s70, %s71
    %p75 = pneg %p69
    %p76 = scmp.eq.s32.totalorder %s8, 1
    %p77 = por %p75, %p76
    %p78 = scmp.ne.s32.totalorder %s70, %s73
    %p79 = scmp.eq.s32.totalorder %s8, 0
    %p80 = por %p78, %p79
    %p81 = scmp.ne.s32.totalorder %s70, %s73
    %p82 = scmp.eq.s32.totalorder %s13, 1
    %p83 = por %p81, %p82
    %p84 = scmp.ne.s32.totalorder %s73, %s74
    %p85 = scmp.eq.s32.totalorder %s13, 0
    %p86 = por %p84, %p85
    %p87 = scmp.ne.s32.totalorder %s73, %s74
    %p88 = scmp.eq.s32.totalorder %s14, 1
    %p89 = por %p87, %p88
    %p91 = scmp.ne.s32.totalorder %s74, %s90
    %p92 = scmp.eq.s32.totalorder %s14, 0
    %p93 = por %p91, %p92
    %p94 = scmp.le.s32.totalorder 1, %s8
    %p95 = scmp.lt.s32.totalorder %s8, 3
    %p96 = pnand %p94, %p95
    %p97 = pneg %p96
    // Predicated region
    $region9: #{bottleneck_cost_batched.1} parent=5 // pred_check
      _
    $region10: #{bottleneck_cost_batched.1} parent=5 // pred_check_branch
      %99 = sbr.rel (%p96) target = $region12
    $region11: #{bottleneck_cost_batched.1} parent=5 // pred_region
      %s100 = ssub.s32 %s8, 1
    $region12: #{bottleneck_cost_batched.1} parent=5 // pred_fallthru
      _
    %p101 = scmp.lt.s32.totalorder %s8, 2
    // Predicated region
    $region13: #{bottleneck_cost_batched.1} parent=5 // pred_check
      %p102 = pneg %p101
    $region14: #{bottleneck_cost_batched.1} parent=5 // pred_check_branch
      %104 = sbr.rel (%p102) target = $region16
    $region15: #{bottleneck_cost_batched.1} parent=5 // pred_region
      // Predicated region
      $region17: #{bottleneck_cost_batched.1} parent=15 // pred_check
        %p105 = pneg %p28
      $region18: #{bottleneck_cost_batched.1} parent=15 // pred_check_branch
        %107 = sbr.rel (%p105) target = $region20
      $region19: #{bottleneck_cost_batched.1} parent=15 // pred_region
        %s108 = smul.u32 4, %s8
        %p109 = scmp.lt.s32.totalorder %s108, 7
        %s110 = scalar_select %p109, %s108, 7
        %s111 = smul.addr %s110, 2
        %s112 = smul.addr %s111, 8
        %s113 = scalar_lea.vmem %s0, %s112
        %s114 = smul.u32 4, %s8
      $region20: #{bottleneck_cost_batched.1} parent=15 // pred_fallthru
        _
      // Predicated region
      $region21: #{bottleneck_cost_batched.1} parent=15 // pred_check
        %p115 = pneg %p54
      $region22: #{bottleneck_cost_batched.1} parent=15 // pred_check_branch
        %117 = sbr.rel (%p115) target = $region24
      $region23: #{bottleneck_cost_batched.1} parent=15 // pred_region
        %s118 = smul.u32 4, %s8
        %p119 = scmp.lt.s32.totalorder %s118, 7
        %s120 = scalar_select %p119, %s118, 7
        %s121 = smul.addr %s120, 2
        %s122 = scalar_lea.vmem %s1, %s121
        %s123 = smul.u32 4, %s8
      $region24: #{bottleneck_cost_batched.1} parent=15 // pred_fallthru
        _
    $region16: #{bottleneck_cost_batched.1} parent=5 // pred_fallthru
      _
    %p124 = scmp.le.s32.totalorder 1, %s8
    %p125 = scmp.lt.s32.totalorder %s8, 3
    %p126 = pnand %p124, %p125
    %p127 = pneg %p126
    // Predicated region
    $region25: #{bottleneck_cost_batched.1} parent=5 // pred_check
      _
    $region26: #{bottleneck_cost_batched.1} parent=5 // pred_check_branch
      %129 = sbr.rel (%p126) target = $region28
    $region27: #{bottleneck_cost_batched.1} parent=5 // pred_region
      %s130 = ssub.s32 %s8, 1
      %s131 = smul.u32 4, %s13
      %p132 = scmp.lt.s32.totalorder %s131, 7
      %s133 = scalar_select %p132, %s131, 7
      %s134 = smul.addr %s133, 2
      %s135 = smul.addr %s134, 8
      %s136 = scalar_lea.vmem %s0, %s135
      %p137 = pneg %p34
      %p138 = pneg %p31
      %s139 = smul.u32 4, %s13
      %p140 = scmp.lt.s32.totalorder %s139, 7
      %s141 = scalar_select %p140, %s139, 7
      %s142 = smul.addr %s141, 2
      %s143 = scalar_lea.vmem %s1, %s142
      %p144 = pneg %p60
      %p145 = pneg %p57
      %p146 = pneg %p86
      %p147 = pneg %p83
      %s148 = smul.u32 4, %s13
      %p149 = scmp.lt.s32.totalorder %s148, 7
      %s150 = scalar_select %p149, %s148, 7
      %s151 = smul.addr %s150, 3
      %s152 = smul.addr %s151, 8
      %s153 = scalar_lea.vmem %s2, %s152
      %s154 = smul.u32 4, %s13
      %p155 = scmp.lt.s32.totalorder %s154, 7
      %s156 = scalar_select %p155, %s154, 7
      %s157 = smul.addr %s156, 2
      %s158 = smul.addr %s157, 8
      %s159 = scalar_lea.vmem %s0, %s158
      %s160 = smul.u32 4, %s13
      %s161 = smul.u32 4, %s13
      %p162 = scmp.lt.s32.totalorder %s161, 7
      %s163 = scalar_select %p162, %s161, 7
      %s164 = smul.addr %s163, 2
      %s165 = scalar_lea.vmem %s1, %s164
      %s166 = smul.u32 4, %s13
      %s167 = smul.u32 4, %s13
      %p168 = scmp.lt.s32.totalorder %s167, 7
      %s169 = scalar_select %p168, %s167, 7
      %s170 = smul.addr %s169, 3
      %s171 = smul.addr %s170, 8
      %s172 = scalar_lea.vmem %s2, %s171
      %s173 = smul.u32 4, %s13
      %v174 = vld [vmem:[%s159] sm:$0xff]
      %v175 = vld [vmem:[%s159 + $0x8] sm:$0xff]
      %v176 = vld [vmem:[%s159 + $0x10] sm:$0xff]
      %v177 = vld [vmem:[%s159 + $0x18] sm:$0xff]
      %v178 = vld [vmem:[%s159 + $0x20] sm:$0xff]
      %v179 = vld [vmem:[%s159 + $0x28] sm:$0xff]
      %v180 = vld [vmem:[%s159 + $0x30] sm:$0xff]
      %v181 = vld [vmem:[%s159 + $0x38] sm:$0xff]
      %v182 = vld [vmem:[%s165] sm:$0x1]
      %v183 = vld [vmem:[%s165 + $0x2] sm:$0x1]
      %v184 = vld [vmem:[%s165 + $0x4] sm:$0x1]
      %v185 = vld [vmem:[%s165 + $0x6] sm:$0x1]
      %v186 = vld [vmem:[%s165 + $0x1] sm:$0x1]
      %v187 = vld [vmem:[%s165 + $0x3] sm:$0x1]
      %v188 = vld [vmem:[%s165 + $0x5] sm:$0x1]
      %v189 = vld [vmem:[%s165 + $0x7] sm:$0x1]
      %198 = vrot.lane.b32.xlu0 %v174, 127
      %v199 = vpop.permute.xlu0 %198
      %200 = vrot.lane.b32.xlu0 %v175, 127
      %v201 = vpop.permute.xlu0 %200
      %202 = vrot.lane.b32.xlu0 %v176, 127
      %v203 = vpop.permute.xlu0 %202
      %204 = vrot.lane.b32.xlu0 %v177, 127
      %v205 = vpop.permute.xlu0 %204
      %206 = vrot.lane.b32.xlu0 %v178, 127
      %v207 = vpop.permute.xlu0 %206
      %208 = vrot.lane.b32.xlu0 %v179, 127
      %v209 = vpop.permute.xlu0 %208
      %210 = vrot.lane.b32.xlu0 %v180, 127
      %v211 = vpop.permute.xlu0 %210
      %212 = vrot.lane.b32.xlu0 %v181, 127
      %v213 = vpop.permute.xlu0 %212
      %vm222 = vcmp.ne.f32.partialorder %v174, %v199
      %vm223 = vcmp.ne.f32.partialorder %v175, %v201
      %vm224 = vcmp.ne.f32.partialorder %v176, %v203
      %vm225 = vcmp.ne.f32.partialorder %v177, %v205
      %vm226 = vcmp.ne.f32.partialorder %v178, %v207
      %vm227 = vcmp.ne.f32.partialorder %v179, %v209
      %vm228 = vcmp.ne.f32.partialorder %v180, %v211
      %vm229 = vcmp.ne.f32.partialorder %v181, %v213
      %vm230 = vcmp.ne.f32.partialorder %v182, %v186
      %vm231 = vcmp.ne.f32.partialorder %v183, %v187
      %vm232 = vcmp.ne.f32.partialorder %v184, %v188
      %vm233 = vcmp.ne.f32.partialorder %v185, %v189
      %234 = vset.pattern.permute.xlu0 0
      %235 = vperm.xlu0 %234, %v174
      %v236 = vpop.permute.xlu0 %235
      %238 = vset.pattern.permute.xlu0 0
      %239 = vperm.xlu0 %238, %v175
      %v240 = vpop.permute.xlu0 %239
      %242 = vset.pattern.permute.xlu0 0
      %243 = vperm.xlu0 %242, %v176
      %v244 = vpop.permute.xlu0 %243
      %246 = vset.pattern.permute.xlu0 0
      %247 = vperm.xlu0 %246, %v177
      %v248 = vpop.permute.xlu0 %247
      %250 = vset.pattern.permute.xlu0 0
      %251 = vperm.xlu0 %250, %v178
      %v252 = vpop.permute.xlu0 %251
      %254 = vset.pattern.permute.xlu0 0
      %255 = vperm.xlu0 %254, %v179
      %v256 = vpop.permute.xlu0 %255
      %258 = vset.pattern.permute.xlu0 0
      %259 = vperm.xlu0 %258, %v180
      %v260 = vpop.permute.xlu0 %259
      %262 = vset.pattern.permute.xlu0 0
      %263 = vperm.xlu0 %262, %v181
      %v264 = vpop.permute.xlu0 %263
      %v266 = vlaneseq
      %v267 = vshrl.u32 %v266, 7
      %v268 = vsub.s32 0, %v267
      %v269 = vrot.slane %v182, %v268
      %v270 = vlaneseq
      %v271 = vshrl.u32 %v270, 7
      %v272 = vsub.s32 0, %v271
      %v273 = vrot.slane %v183, %v272
      %v274 = vlaneseq
      %v275 = vshrl.u32 %v274, 7
      %v276 = vsub.s32 0, %v275
      %v277 = vrot.slane %v184, %v276
      %v278 = vlaneseq
      %v279 = vshrl.u32 %v278, 7
      %v280 = vsub.s32 0, %v279
      %v281 = vrot.slane %v185, %v280
      %v282 = vsub.f32 %v236, %v269
      %v283 = vsub.f32 %v240, %v269
      %v284 = vsub.f32 %v244, %v273
      %v285 = vsub.f32 %v248, %v273
      %v286 = vsub.f32 %v252, %v277
      %v287 = vsub.f32 %v256, %v277
      %v288 = vsub.f32 %v260, %v281
      %v289 = vsub.f32 %v264, %v281
      %v290 = vand.u32 2147483647, %v282
      %v291 = vand.u32 2147483647, %v283
      %v292 = vand.u32 2147483647, %v284
      %v293 = vand.u32 2147483647, %v285
      %v294 = vand.u32 2147483647, %v286
      %v295 = vand.u32 2147483647, %v287
      %v296 = vand.u32 2147483647, %v288
      %v297 = vand.u32 2147483647, %v289
      %298 = vset.pattern.permute.xlu0 1
      %299 = vperm.xlu0 %298, %v174
      %v300 = vpop.permute.xlu0 %299
      %302 = vset.pattern.permute.xlu0 1
      %303 = vperm.xlu0 %302, %v175
      %v304 = vpop.permute.xlu0 %303
      %306 = vset.pattern.permute.xlu0 1
      %307 = vperm.xlu0 %306, %v176
      %v308 = vpop.permute.xlu0 %307
      %310 = vset.pattern.permute.xlu0 1
      %311 = vperm.xlu0 %310, %v177
      %v312 = vpop.permute.xlu0 %311
      %314 = vset.pattern.permute.xlu0 1
      %315 = vperm.xlu0 %314, %v178
      %v316 = vpop.permute.xlu0 %315
      %318 = vset.pattern.permute.xlu0 1
      %319 = vperm.xlu0 %318, %v179
      %v320 = vpop.permute.xlu0 %319
      %322 = vset.pattern.permute.xlu0 1
      %323 = vperm.xlu0 %322, %v180
      %v324 = vpop.permute.xlu0 %323
      %326 = vset.pattern.permute.xlu0 1
      %327 = vperm.xlu0 %326, %v181
      %v328 = vpop.permute.xlu0 %327
      %v330 = vlaneseq
      %v331 = vshrl.u32 %v330, 7
      %v332 = vsub.s32 0, %v331
      %v333 = vrot.slane %v186, %v332
      %v334 = vlaneseq
      %v335 = vshrl.u32 %v334, 7
      %v336 = vsub.s32 0, %v335
      %v337 = vrot.slane %v187, %v336
      %v338 = vlaneseq
      %v339 = vshrl.u32 %v338, 7
      %v340 = vsub.s32 0, %v339
      %v341 = vrot.slane %v188, %v340
      %v342 = vlaneseq
      %v343 = vshrl.u32 %v342, 7
      %v344 = vsub.s32 0, %v343
      %v345 = vrot.slane %v189, %v344
      %v346 = vsub.f32 %v300, %v333
      %v347 = vsub.f32 %v304, %v333
      %v348 = vsub.f32 %v308, %v337
      %v349 = vsub.f32 %v312, %v337
      %v350 = vsub.f32 %v316, %v341
      %v351 = vsub.f32 %v320, %v341
      %v352 = vsub.f32 %v324, %v345
      %v353 = vsub.f32 %v328, %v345
      %v354 = vand.u32 2147483647, %v346
      %v355 = vand.u32 2147483647, %v347
      %v356 = vand.u32 2147483647, %v348
      %v357 = vand.u32 2147483647, %v349
      %v358 = vand.u32 2147483647, %v350
      %v359 = vand.u32 2147483647, %v351
      %v360 = vand.u32 2147483647, %v352
      %v361 = vand.u32 2147483647, %v353
      %v362 = vmax.f32 %v290, %v354
      %v363 = vmax.f32 %v291, %v355
      %v364 = vmax.f32 %v292, %v356
      %v365 = vmax.f32 %v293, %v357
      %v366 = vmax.f32 %v294, %v358
      %v367 = vmax.f32 %v295, %v359
      %v368 = vmax.f32 %v296, %v360
      %v369 = vmax.f32 %v297, %v361
      %v370 = vsel %vm222, 1, 0
      %v371 = vsel %vm223, 1, 0
      %v372 = vsel %vm224, 1, 0
      %v373 = vsel %vm225, 1, 0
      %v374 = vsel %vm226, 1, 0
      %v375 = vsel %vm227, 1, 0
      %v376 = vsel %vm228, 1, 0
      %v377 = vsel %vm229, 1, 0
      %378 = vset.pattern.permute.xlu0 0
      %379 = vperm.xlu0 %378, %v370
      %v380 = vpop.permute.xlu0 %379
      %381 = vset.pattern.permute.xlu0 0
      %382 = vperm.xlu0 %381, %v371
      %v383 = vpop.permute.xlu0 %382
      %384 = vset.pattern.permute.xlu0 0
      %385 = vperm.xlu0 %384, %v372
      %v386 = vpop.permute.xlu0 %385
      %387 = vset.pattern.permute.xlu0 0
      %388 = vperm.xlu0 %387, %v373
      %v389 = vpop.permute.xlu0 %388
      %390 = vset.pattern.permute.xlu0 0
      %391 = vperm.xlu0 %390, %v374
      %v392 = vpop.permute.xlu0 %391
      %393 = vset.pattern.permute.xlu0 0
      %394 = vperm.xlu0 %393, %v375
      %v395 = vpop.permute.xlu0 %394
      %396 = vset.pattern.permute.xlu0 0
      %397 = vperm.xlu0 %396, %v376
      %v398 = vpop.permute.xlu0 %397
      %399 = vset.pattern.permute.xlu0 0
      %400 = vperm.xlu0 %399, %v377
      %v401 = vpop.permute.xlu0 %400
      %vm402 = vcmp.eq.s32.totalorder %v380, 1
      %vm403 = vcmp.eq.s32.totalorder %v383, 1
      %vm404 = vcmp.eq.s32.totalorder %v386, 1
      %vm405 = vcmp.eq.s32.totalorder %v389, 1
      %vm406 = vcmp.eq.s32.totalorder %v392, 1
      %vm407 = vcmp.eq.s32.totalorder %v395, 1
      %vm408 = vcmp.eq.s32.totalorder %v398, 1
      %vm409 = vcmp.eq.s32.totalorder %v401, 1
      %v410 = vsel %vm230, 1, 0
      %v411 = vsel %vm231, 1, 0
      %v412 = vsel %vm232, 1, 0
      %v413 = vsel %vm233, 1, 0
      %v414 = vlaneseq
      %v415 = vshrl.u32 %v414, 7
      %v416 = vsub.s32 0, %v415
      %v417 = vrot.slane %v410, %v416
      %v418 = vlaneseq
      %v419 = vshrl.u32 %v418, 7
      %v420 = vsub.s32 0, %v419
      %v421 = vrot.slane %v411, %v420
      %v422 = vlaneseq
      %v423 = vshrl.u32 %v422, 7
      %v424 = vsub.s32 0, %v423
      %v425 = vrot.slane %v412, %v424
      %v426 = vlaneseq
      %v427 = vshrl.u32 %v426, 7
      %v428 = vsub.s32 0, %v427
      %v429 = vrot.slane %v413, %v428
      %vm430 = vcmp.eq.s32.totalorder %v417, 1
      %vm431 = vcmp.eq.s32.totalorder %v421, 1
      %vm432 = vcmp.eq.s32.totalorder %v425, 1
      %vm433 = vcmp.eq.s32.totalorder %v429, 1
      %vm434 = vmand %vm402, %vm430
      %vm435 = vmand %vm403, %vm430
      %vm436 = vmand %vm404, %vm431
      %vm437 = vmand %vm405, %vm431
      %vm438 = vmand %vm406, %vm432
      %vm439 = vmand %vm407, %vm432
      %vm440 = vmand %vm408, %vm433
      %vm441 = vmand %vm409, %vm433
      %v442 = vsel %vm434, %v362, 1e+30
      %v443 = vsel %vm435, %v363, 1e+30
      %v444 = vsel %vm436, %v364, 1e+30
      %v445 = vsel %vm437, %v365, 1e+30
      %v446 = vsel %vm438, %v366, 1e+30
      %v447 = vsel %vm439, %v367, 1e+30
      %v448 = vsel %vm440, %v368, 1e+30
      %v449 = vsel %vm441, %v369, 1e+30
      %450 = vrot.lane.b32.xlu0 %v174, 1
      %v451 = vpop.permute.xlu0 %450
      %452 = vrot.lane.b32.xlu0 %v175, 1
      %v453 = vpop.permute.xlu0 %452
      %454 = vrot.lane.b32.xlu0 %v176, 1
      %v455 = vpop.permute.xlu0 %454
      %456 = vrot.lane.b32.xlu0 %v177, 1
      %v457 = vpop.permute.xlu0 %456
      %458 = vrot.lane.b32.xlu0 %v178, 1
      %v459 = vpop.permute.xlu0 %458
      %460 = vrot.lane.b32.xlu0 %v179, 1
      %v461 = vpop.permute.xlu0 %460
      %462 = vrot.lane.b32.xlu0 %v180, 1
      %v463 = vpop.permute.xlu0 %462
      %464 = vrot.lane.b32.xlu0 %v181, 1
      %v465 = vpop.permute.xlu0 %464
      %v474 = vsub.f32 %v174, %v451
      %v475 = vsub.f32 %v175, %v453
      %v476 = vsub.f32 %v176, %v455
      %v477 = vsub.f32 %v177, %v457
      %v478 = vsub.f32 %v178, %v459
      %v479 = vsub.f32 %v179, %v461
      %v480 = vsub.f32 %v180, %v463
      %v481 = vsub.f32 %v181, %v465
      %v482 = vand.u32 2147483647, %v474
      %v483 = vand.u32 2147483647, %v475
      %v484 = vand.u32 2147483647, %v476
      %v485 = vand.u32 2147483647, %v477
      %v486 = vand.u32 2147483647, %v478
      %v487 = vand.u32 2147483647, %v479
      %v488 = vand.u32 2147483647, %v480
      %v489 = vand.u32 2147483647, %v481
      %v490 = vmul.f32 %v482, 0.5
      %v491 = vmul.f32 %v483, 0.5
      %v492 = vmul.f32 %v484, 0.5
      %v493 = vmul.f32 %v485, 0.5
      %v494 = vmul.f32 %v486, 0.5
      %v495 = vmul.f32 %v487, 0.5
      %v496 = vmul.f32 %v488, 0.5
      %v497 = vmul.f32 %v489, 0.5
      %506 = vrot.lane.b32.xlu0 %v490, 127
      %v507 = vpop.permute.xlu0 %506
      %508 = vrot.lane.b32.xlu0 %v491, 127
      %v509 = vpop.permute.xlu0 %508
      %510 = vrot.lane.b32.xlu0 %v492, 127
      %v511 = vpop.permute.xlu0 %510
      %512 = vrot.lane.b32.xlu0 %v493, 127
      %v513 = vpop.permute.xlu0 %512
      %514 = vrot.lane.b32.xlu0 %v494, 127
      %v515 = vpop.permute.xlu0 %514
      %516 = vrot.lane.b32.xlu0 %v495, 127
      %v517 = vpop.permute.xlu0 %516
      %518 = vrot.lane.b32.xlu0 %v496, 127
      %v519 = vpop.permute.xlu0 %518
      %520 = vrot.lane.b32.xlu0 %v497, 127
      %v521 = vpop.permute.xlu0 %520
      %v530 = vsel %vm222, %v507, 0.0
      %v531 = vsel %vm223, %v509, 0.0
      %v532 = vsel %vm224, %v511, 0.0
      %v533 = vsel %vm225, %v513, 0.0
      %v534 = vsel %vm226, %v515, 0.0
      %v535 = vsel %vm227, %v517, 0.0
      %v536 = vsel %vm228, %v519, 0.0
      %v537 = vsel %vm229, %v521, 0.0
      %v538 = vsub.f32 %v186, %v182
      %v539 = vsub.f32 %v187, %v183
      %v540 = vsub.f32 %v188, %v184
      %v541 = vsub.f32 %v189, %v185
      %v542 = vand.u32 2147483647, %v538
      %v543 = vand.u32 2147483647, %v539
      %v544 = vand.u32 2147483647, %v540
      %v545 = vand.u32 2147483647, %v541
      %v546 = vmul.f32 %v542, 0.5
      %v547 = vmul.f32 %v543, 0.5
      %v548 = vmul.f32 %v544, 0.5
      %v549 = vmul.f32 %v545, 0.5
      %v550 = vsel %vm230, %v546, 0.0
      %v551 = vsel %vm231, %v547, 0.0
      %v552 = vsel %vm232, %v548, 0.0
      %v553 = vsel %vm233, %v549, 0.0
      %v554 = vlaneseq
      %v555 = vand.u32 %v554, 127
      %vm556 = vcmp.ge.s32.totalorder %v555, 16
      %vm557 = vcmp.lt.s32.totalorder %v555, 32
      %vm558 = vmand %vm556, %vm557
      %560 = vset.pattern.permute.xlu0 0
      %561 = vperm.xlu0 %560, %v530
      %v562 = vpop.permute.xlu0 %561
      %565 = vset.pattern.permute.xlu0 0
      %566 = vperm.xlu0 %565, %v531
      %v567 = vpop.permute.xlu0 %566
      %570 = vset.pattern.permute.xlu0 0
      %571 = vperm.xlu0 %570, %v532
      %v572 = vpop.permute.xlu0 %571
      %575 = vset.pattern.permute.xlu0 0
      %576 = vperm.xlu0 %575, %v533
      %v577 = vpop.permute.xlu0 %576
      %580 = vset.pattern.permute.xlu0 0
      %581 = vperm.xlu0 %580, %v534
      %v582 = vpop.permute.xlu0 %581
      %585 = vset.pattern.permute.xlu0 0
      %586 = vperm.xlu0 %585, %v535
      %v587 = vpop.permute.xlu0 %586
      %590 = vset.pattern.permute.xlu0 0
      %591 = vperm.xlu0 %590, %v536
      %v592 = vpop.permute.xlu0 %591
      %595 = vset.pattern.permute.xlu0 0
      %596 = vperm.xlu0 %595, %v537
      %v597 = vpop.permute.xlu0 %596
      %v599 = vsel %vm558, %v562, %v442
      %v600 = vsel %vm558, %v567, %v443
      %v601 = vsel %vm558, %v572, %v444
      %v602 = vsel %vm558, %v577, %v445
      %v603 = vsel %vm558, %v582, %v446
      %v604 = vsel %vm558, %v587, %v447
      %v605 = vsel %vm558, %v592, %v448
      %v606 = vsel %vm558, %v597, %v449
      %607 = vst [vmem:[%s172] sm:$0xff] %v599
      %608 = vst [vmem:[%s172 + $0x8] sm:$0xff] %v600
      %609 = vst [vmem:[%s172 + $0x18] sm:$0xff] %v601
      %610 = vst [vmem:[%s172 + $0x20] sm:$0xff] %v602
      %611 = vst [vmem:[%s172 + $0x30] sm:$0xff] %v603
      %612 = vst [vmem:[%s172 + $0x38] sm:$0xff] %v604
      %613 = vst [vmem:[%s172 + $0x48] sm:$0xff] %v605
      %614 = vst [vmem:[%s172 + $0x50] sm:$0xff] %v606
      %615 = vmin.xlane.f32.xlu0 %v599
      %v616 = vpop.xlane.xlu0 %615
      %617 = vmin.xlane.f32.xlu0 %v600
      %v618 = vpop.xlane.xlu0 %617
      %619 = vmin.xlane.f32.xlu0 %v601
      %v620 = vpop.xlane.xlu0 %619
      %621 = vmin.xlane.f32.xlu0 %v602
      %v622 = vpop.xlane.xlu0 %621
      %623 = vmin.xlane.f32.xlu0 %v603
      %v624 = vpop.xlane.xlu0 %623
      %625 = vmin.xlane.f32.xlu0 %v604
      %v626 = vpop.xlane.xlu0 %625
      %627 = vmin.xlane.f32.xlu0 %v605
      %v628 = vpop.xlane.xlu0 %627
      %629 = vmin.xlane.f32.xlu0 %v606
      %v630 = vpop.xlane.xlu0 %629
      %v631 = vmax.f32 %v616, %v618
      %v632 = vrot.slane %v631, 4
      %v633 = vmax.f32 %v631, %v632
      %v634 = vrot.slane %v633, 2
      %v635 = vmax.f32 %v633, %v634
      %v636 = vrot.slane %v635, 1
      %v637 = vmax.f32 %v635, %v636
      %v638 = vmax.f32 %v620, %v622
      %v639 = vrot.slane %v638, 4
      %v640 = vmax.f32 %v638, %v639
      %v641 = vrot.slane %v640, 2
      %v642 = vmax.f32 %v640, %v641
      %v643 = vrot.slane %v642, 1
      %v644 = vmax.f32 %v642, %v643
      %v645 = vmax.f32 %v624, %v626
      %v646 = vrot.slane %v645, 4
      %v647 = vmax.f32 %v645, %v646
      %v648 = vrot.slane %v647, 2
      %v649 = vmax.f32 %v647, %v648
      %v650 = vrot.slane %v649, 1
      %v651 = vmax.f32 %v649, %v650
      %v652 = vmax.f32 %v628, %v630
      %v653 = vrot.slane %v652, 4
      %v654 = vmax.f32 %v652, %v653
      %v655 = vrot.slane %v654, 2
      %v656 = vmax.f32 %v654, %v655
      %v657 = vrot.slane %v656, 1
      %v658 = vmax.f32 %v656, %v657
      %v659 = vmin.f32 %v442, %v443
      %v660 = vrot.slane %v659, 4
      %v661 = vmin.f32 %v659, %v660
      %v662 = vrot.slane %v661, 2
      %v663 = vmin.f32 %v661, %v662
      %v664 = vrot.slane %v663, 1
      %v665 = vmin.f32 %v663, %v664
      %v666 = vmin.f32 %v444, %v445
      %v667 = vrot.slane %v666, 4
      %v668 = vmin.f32 %v666, %v667
      %v669 = vrot.slane %v668, 2
      %v670 = vmin.f32 %v668, %v669
      %v671 = vrot.slane %v670, 1
      %v672 = vmin.f32 %v670, %v671
      %v673 = vmin.f32 %v446, %v447
      %v674 = vrot.slane %v673, 4
      %v675 = vmin.f32 %v673, %v674
      %v676 = vrot.slane %v675, 2
      %v677 = vmin.f32 %v675, %v676
      %v678 = vrot.slane %v677, 1
      %v679 = vmin.f32 %v677, %v678
      %v680 = vmin.f32 %v448, %v449
      %v681 = vrot.slane %v680, 4
      %v682 = vmin.f32 %v680, %v681
      %v683 = vrot.slane %v682, 2
      %v684 = vmin.f32 %v682, %v683
      %v685 = vrot.slane %v684, 1
      %v686 = vmin.f32 %v684, %v685
      %v687 = vmin.f32 %v665, %v550
      %v688 = vmin.f32 %v672, %v551
      %v689 = vmin.f32 %v679, %v552
      %v690 = vmin.f32 %v686, %v553
      %vm691 = vcmask 1040384
      %v692 = vsel %vm691, %v687, -inf
      %693 = vmax.xlane.f32.xlu0 %v692
      %v694 = vpop.xlane.xlu0 %693
      %v695 = vsel %vm691, %v688, -inf
      %696 = vmax.xlane.f32.xlu0 %v695
      %v697 = vpop.xlane.xlu0 %696
      %v698 = vsel %vm691, %v689, -inf
      %699 = vmax.xlane.f32.xlu0 %v698
      %v700 = vpop.xlane.xlu0 %699
      %v701 = vsel %vm691, %v690, -inf
      %702 = vmax.xlane.f32.xlu0 %v701
      %v703 = vpop.xlane.xlu0 %702
      %v704 = vmax.f32 %v637, %v694
      %v705 = vmax.f32 %v644, %v697
      %v706 = vmax.f32 %v651, %v700
      %v707 = vmax.f32 %v658, %v703
      %vm708 = vcmask 7168
      %v709 = vsel %vm708, %v530, -inf
      %v710 = vsel %vm708, %v531, -inf
      %v711 = vmax.f32 %v709, %v710
      %v712 = vrot.slane %v711, 4
      %v713 = vmax.f32 %v711, %v712
      %v714 = vrot.slane %v713, 2
      %v715 = vmax.f32 %v713, %v714
      %v716 = vrot.slane %v715, 1
      %v717 = vmax.f32 %v715, %v716
      %v718 = vsel %vm708, %v532, -inf
      %v719 = vsel %vm708, %v533, -inf
      %v720 = vmax.f32 %v718, %v719
      %v721 = vrot.slane %v720, 4
      %v722 = vmax.f32 %v720, %v721
      %v723 = vrot.slane %v722, 2
      %v724 = vmax.f32 %v722, %v723
      %v725 = vrot.slane %v724, 1
      %v726 = vmax.f32 %v724, %v725
      %v727 = vsel %vm708, %v534, -inf
      %v728 = vsel %vm708, %v535, -inf
      %v729 = vmax.f32 %v727, %v728
      %v730 = vrot.slane %v729, 4
      %v731 = vmax.f32 %v729, %v730
      %v732 = vrot.slane %v731, 2
      %v733 = vmax.f32 %v731, %v732
      %v734 = vrot.slane %v733, 1
      %v735 = vmax.f32 %v733, %v734
      %v736 = vsel %vm708, %v536, -inf
      %v737 = vsel %vm708, %v537, -inf
      %v738 = vmax.f32 %v736, %v737
      %v739 = vrot.slane %v738, 4
      %v740 = vmax.f32 %v738, %v739
      %v741 = vrot.slane %v740, 2
      %v742 = vmax.f32 %v740, %v741
      %v743 = vrot.slane %v742, 1
      %v744 = vmax.f32 %v742, %v743
      %v745 = vsel %vm691, %v550, -inf
      %746 = vmax.xlane.f32.xlu0 %v745
      %v747 = vpop.xlane.xlu0 %746
      %v748 = vsel %vm691, %v551, -inf
      %749 = vmax.xlane.f32.xlu0 %v748
      %v750 = vpop.xlane.xlu0 %749
      %v751 = vsel %vm691, %v552, -inf
      %752 = vmax.xlane.f32.xlu0 %v751
      %v753 = vpop.xlane.xlu0 %752
      %v754 = vsel %vm691, %v553, -inf
      %755 = vmax.xlane.f32.xlu0 %v754
      %v756 = vpop.xlane.xlu0 %755
      %v757 = vmax.f32 %v717, %v747
      %v758 = vmax.f32 %v726, %v750
      %v759 = vmax.f32 %v735, %v753
      %v760 = vmax.f32 %v744, %v756
      %v761 = vlaneseq
      %v762 = vshrl.u32 %v761, 7
      %v763 = vlaneseq
      %v764 = vshrl.u32 %v763, 7
      %v765 = vsub.s32 0, %v764
      %v766 = vrot.slane %v550, %v765
      %v767 = vlaneseq
      %v768 = vshrl.u32 %v767, 7
      %v769 = vsub.s32 0, %v768
      %v770 = vrot.slane %v551, %v769
      %v771 = vlaneseq
      %v772 = vshrl.u32 %v771, 7
      %v773 = vsub.s32 0, %v772
      %v774 = vrot.slane %v552, %v773
      %v775 = vlaneseq
      %v776 = vshrl.u32 %v775, 7
      %v777 = vsub.s32 0, %v776
      %v778 = vrot.slane %v553, %v777
      %v779 = vlaneseq
      %v780 = vshrl.u32 %v779, 7
      %v781 = vsub.s32 0, %v780
      %v782 = vrot.slane %v704, %v781
      %v783 = vlaneseq
      %v784 = vshrl.u32 %v783, 7
      %v785 = vsub.s32 0, %v784
      %v786 = vrot.slane %v705, %v785
      %v787 = vlaneseq
      %v788 = vshrl.u32 %v787, 7
      %v789 = vsub.s32 0, %v788
      %v790 = vrot.slane %v706, %v789
      %v791 = vlaneseq
      %v792 = vshrl.u32 %v791, 7
      %v793 = vsub.s32 0, %v792
      %v794 = vrot.slane %v707, %v793
      %s796 = vtos %v757
      %v797 = vstv %s796
      %s800 = vtos %v758
      %v801 = vstv %s800
      %s804 = vtos %v759
      %v805 = vstv %s804
      %s808 = vtos %v760
      %v809 = vstv %s808
      %vm811 = vcmp.eq.s32.totalorder %v762, 0
      %vm812 = vcmp.eq.s32.totalorder %v762, 1
      %vm813 = vcmp.eq.s32.totalorder %v762, 2
      %v814 = vsel %vm813, %v797, 0.0
      %v815 = vsel %vm813, %v801, 0.0
      %v816 = vsel %vm813, %v805, 0.0
      %v817 = vsel %vm813, %v809, 0.0
      %v818 = vsel %vm812, %v782, %v814
      %v819 = vsel %vm812, %v786, %v815
      %v820 = vsel %vm812, %v790, %v816
      %v821 = vsel %vm812, %v794, %v817
      %v822 = vsel %vm811, %v766, %v818
      %v823 = vsel %vm811, %v770, %v819
      %v824 = vsel %vm811, %v774, %v820
      %v825 = vsel %vm811, %v778, %v821
      %826 = vst [vmem:[%s172 + $0x10] sm:$0xff] %v822
      %827 = vst [vmem:[%s172 + $0x28] sm:$0xff] %v823
      %828 = vst [vmem:[%s172 + $0x40] sm:$0xff] %v824
      %829 = vst [vmem:[%s172 + $0x58] sm:$0xff] %v825
      %s830 = smul.u32 4, %s13
      %p831 = scmp.lt.s32.totalorder %s830, 7
      %s832 = scalar_select %p831, %s830, 7
      %s833 = smul.addr %s832, 3
      %s834 = smul.addr %s833, 8
      %s835 = scalar_lea.vmem %s2, %s834
      // Predicated region
      $region29: #{bottleneck_cost_batched.1} parent=27 // pred_check
        %p836 = pneg %p83
      $region30: #{bottleneck_cost_batched.1} parent=27 // pred_check_branch
        %838 = sbr.rel (%p836) target = $region32
      $region31: #{bottleneck_cost_batched.1} parent=27 // pred_region
        %s839 = smul.u32 4, %s13
      $region32: #{bottleneck_cost_batched.1} parent=27 // pred_fallthru
        _
    $region28: #{bottleneck_cost_batched.1} parent=5 // pred_fallthru
      _
    %p840 = scmp.le.s32.totalorder 2, %s8
    // Predicated region
    $region33: #{bottleneck_cost_batched.1} parent=5 // pred_check
      %p841 = pneg %p840
    $region34: #{bottleneck_cost_batched.1} parent=5 // pred_check_branch
      %843 = sbr.rel (%p841) target = $region36
    $region35: #{bottleneck_cost_batched.1} parent=5 // pred_region
      %s844 = ssub.s32 %s8, 2
      // Predicated region
      $region37: #{bottleneck_cost_batched.1} parent=35 // pred_check
        %p845 = pneg %p89
      $region38: #{bottleneck_cost_batched.1} parent=35 // pred_check_branch
        %847 = sbr.rel (%p845) target = $region40
      $region39: #{bottleneck_cost_batched.1} parent=35 // pred_region
        %s848 = smul.u32 4, %s14
        %p849 = scmp.lt.s32.totalorder %s848, 7
        %s850 = scalar_select %p849, %s848, 7
        %s851 = smul.addr %s850, 3
        %s852 = smul.addr %s851, 8
        %s853 = scalar_lea.vmem %s2, %s852
      $region40: #{bottleneck_cost_batched.1} parent=35 // pred_fallthru
        _
    $region36: #{bottleneck_cost_batched.1} parent=5 // pred_fallthru
      _
  $region6: #{bottleneck_cost_batched.1} parent=0 // loop_footer
    %s12 = sadd.s32 1, %s8
  $region7: #{bottleneck_cost_batched.1} parent=0 // loop_footer_branch
    %7 = sbr.rel target = $region3
  $region8: #{bottleneck_cost_batched.1} parent=0 // loop_exit
    _

</llo_original>
